<compile_context>
chip_gen: v5e
topology: v5e:2x2
jax: 0.10.0
libtpu: 0.0.40
codegen_flags: <defaults>
</compile_context>

<pallas_src>
import functools

import jax
import jax.numpy as jnp
from jax.experimental import pallas as pl
from jax.experimental.pallas import tpu as pltpu

NEG_SLOPE = 0.01   # nn.LeakyReLU default
BN_EPS = 1e-5      # nn.BatchNorm1d default
LANE = 128         # TPU vreg lane width


def _make_mlp_kernel(n_bn_blocks):
    """Kernel: [Linear -> BN(train) -> LeakyReLU] * n_bn_blocks -> Linear.

    x_ref  : (B, 128)                    lane-padded f32 input
    w_ref  : (n_bn_blocks+1, 128, 128)   packed weights, each (in, out),
                                         zero-padded to 128x128
    v_ref  : (8, 128)                    rows (2l, 2l+1) = gamma_l, beta_l ;
                                         row 2*n_bn_blocks = final Linear bias
    out_ref: (B, 128)                    lane-dense output (first 4 lanes real)
    """

    def kernel(x_ref, w_ref, v_ref, out_ref):
        h = x_ref[...]                                    # (B, 128) f32

        for l in range(n_bn_blocks):                      # static unroll
            w = w_ref[l]                                  # (128,128), (in,out)
            gamma = v_ref[2 * l:2 * l + 1, :]             # (1,128)
            beta = v_ref[2 * l + 1:2 * l + 2, :]          # (1,128)

            # Linear (bias omitted: training-mode BN mean-subtraction cancels
            # a constant per-column bias exactly).
            h = jnp.dot(h, w, preferred_element_type=jnp.float32)

            # BatchNorm1d, training mode: one-pass batch stats + fused affine.
            mean = jnp.mean(h, axis=0, keepdims=True)     # (1,128)  XLU
            msq = jnp.mean(h * h, axis=0, keepdims=True)  # (1,128)  XLU
            var = msq - mean * mean                       # biased variance
            scale = gamma * jax.lax.rsqrt(var + BN_EPS)   # rsqrt -> EUP slot
            shift = beta - mean * scale
            h = h * scale + shift                         # padded lanes stay 0

            # LeakyReLU
            h = jnp.where(h >= 0, h, NEG_SLOPE * h)

        # Final Linear (keeps its bias).
        w_f = w_ref[n_bn_blocks]                          # (128,128)
        b_f = v_ref[2 * n_bn_blocks:2 * n_bn_blocks + 1, :]
        out_ref[...] = (jnp.dot(h, w_f, preferred_element_type=jnp.float32)
                        + b_f).astype(out_ref.dtype)

    return kernel


def init_params(key, ns, n_intm_layers, challenge_bits):
    """PyTorch-convention params: [W, b, gamma, beta] per BN block, then [W, b]."""
    params = []

    def linear(key, in_f, out_f):
        kw, kb = jax.random.split(key)
        bound = 1.0 / jnp.sqrt(in_f)
        w = jax.random.uniform(kw, (out_f, in_f), jnp.float32, -bound, bound)
        b = jax.random.uniform(kb, (1, out_f), jnp.float32, -bound, bound)
        return w, b

    dims = [challenge_bits, ns]
    cnt = ns
    for _ in range(n_intm_layers):
        cnt = int(cnt // 2)
        dims.append(cnt)

    keys = jax.random.split(key, len(dims))
    for i in range(1, len(dims)):
        w, b = linear(keys[i - 1], dims[i - 1], dims[i])
        gamma = jnp.ones((1, dims[i]), jnp.float32)   # BatchNorm1d weight init
        beta = jnp.zeros((1, dims[i]), jnp.float32)   # BatchNorm1d bias init
        params.extend([w, b, gamma, beta])

    w_f, b_f = linear(keys[-1], dims[-1], 4)
    params.extend([w_f, b_f])
    return params, dims


def pack_params(params, n_bn_blocks):
    """Pre-transpose, zero-pad to 128 lanes, pack into two VMEM slabs."""
    w_chunks = []
    vec_rows = []
    for l in range(n_bn_blocks):
        w, _b, gamma, beta = params[4 * l:4 * l + 4]   # bias dropped (BN cancels)
        out_f, in_f = w.shape
        wt = jnp.zeros((LANE, LANE), jnp.float32).at[:in_f, :out_f].set(w.T)
        w_chunks.append(wt[None])
        vec_rows.append(jnp.zeros((1, LANE), jnp.float32).at[:, :out_f].set(gamma))
        vec_rows.append(jnp.zeros((1, LANE), jnp.float32).at[:, :out_f].set(beta))

    w_f, b_f = params[-2], params[-1]
    out_f, in_f = w_f.shape
    w_chunks.append(
        jnp.zeros((LANE, LANE), jnp.float32).at[:in_f, :out_f].set(w_f.T)[None])
    vec_rows.append(jnp.zeros((1, LANE), jnp.float32).at[:, :out_f].set(b_f))

    w_packed = jnp.concatenate(w_chunks, axis=0)       # (n+1, 128, 128)
    v_packed = jnp.concatenate(vec_rows, axis=0)       # (2n+1, 128)
    pad = (-v_packed.shape[0]) % 8                     # sublane-align the rows
    if pad:
        v_packed = jnp.concatenate(
            [v_packed, jnp.zeros((pad, LANE), jnp.float32)], axis=0)
    return w_packed, v_packed


@functools.partial(jax.jit, static_argnames=("n_bn_blocks",))
def switchable_star_forward(x, w_packed, v_packed, n_bn_blocks):
    B, cb = x.shape
    # Lane-pad the input once in the wrapper (layout plumbing, not compute).
    x_pad = jnp.zeros((B, LANE), jnp.float32).at[:, :cb].set(
        x.astype(jnp.float32))

    kernel = _make_mlp_kernel(n_bn_blocks)
    vmem = pl.BlockSpec(memory_space=pltpu.MemorySpace.VMEM)
    out = pl.pallas_call(
        kernel,
        out_shape=jax.ShapeDtypeStruct((B, LANE), jnp.float32),
        in_specs=[vmem, vmem, vmem],
        out_specs=vmem,
    )(x_pad, w_packed, v_packed)
    # Real logits are the first 4 lanes; .squeeze() matches the PyTorch forward.
    return jnp.squeeze(out[:, :4])


def reference_forward(x, params, n_bn_blocks):
    """Pure-JAX reference of the exact PyTorch math (bias kept, two-pass var)."""
    h = x.astype(jnp.float32)
    idx = 0
    for _ in range(n_bn_blocks):
        w, b, gamma, beta = params[idx:idx + 4]
        idx += 4
        h = h @ w.T + b
        mean = jnp.mean(h, axis=0, keepdims=True)
        var = jnp.mean((h - mean) ** 2, axis=0, keepdims=True)
        h = (h - mean) * jax.lax.rsqrt(var + BN_EPS) * gamma + beta
        h = jnp.where(h >= 0, h, NEG_SLOPE * h)
    w_f, b_f = params[idx], params[idx + 1]
    return jnp.squeeze(h @ w_f.T + b_f)


if __name__ == "__main__":
    # Small config consistent with the module:
    #   ns=32, n_intm_layers=2, challenge_bits=16, batch=8
    ns, n_intm_layers, challenge_bits = 32, 2, 16
    batch = 8
    n_bn_blocks = 1 + n_intm_layers  # first (Linear->BN->LReLU) + intermediates

    key = jax.random.PRNGKey(0)
    kx, kp = jax.random.split(key)
    x = jax.random.normal(kx, (batch, challenge_bits), jnp.float32)
    params, dims = init_params(kp, ns, n_intm_layers, challenge_bits)
    w_packed, v_packed = pack_params(params, n_bn_blocks)

    out = switchable_star_forward(x, w_packed, v_packed, n_bn_blocks)
    out = jax.block_until_ready(out)

    ref = reference_forward(x, params, n_bn_blocks)
    assert out.shape == ref.shape == (batch, 4)
    assert jnp.allclose(out, ref, atol=1e-4, rtol=1e-4)

    print("KERNEL_OK")
</pallas_src>

<mosaic_0001>
module attributes {stable_mosaic.version = 11 : i64} {
  func.func @kernel(%arg0: memref<8x128xf32, #tpu.memory_space<vmem>>, %arg1: memref<4x128x128xf32, #tpu.memory_space<vmem>>, %arg2: memref<8x128xf32, #tpu.memory_space<vmem>>, %arg3: memref<8x128xf32, #tpu.memory_space<vmem>>) attributes {dimension_semantics = [], scalar_prefetch = 0 : i64, scratch_operands = 0 : i64, tpu.core_type = #tpu.core_type<tc>} {
    %c0 = arith.constant 0 : index
    %c0_0 = arith.constant 0 : index
    %0 = vector.load %arg0[%c0, %c0_0] : memref<8x128xf32, #tpu.memory_space<vmem>>, vector<8x128xf32>
    %c0_1 = arith.constant 0 : index
    %c0_2 = arith.constant 0 : index
    %c0_3 = arith.constant 0 : index
    %1 = vector.load %arg1[%c0_1, %c0_2, %c0_3] : memref<4x128x128xf32, #tpu.memory_space<vmem>>, vector<1x128x128xf32>
    %2 = vector.shape_cast %1 : vector<1x128x128xf32> to vector<128x128xf32>
    %c0_4 = arith.constant 0 : index
    %c0_5 = arith.constant 0 : index
    %3 = vector.load %arg2[%c0_4, %c0_5] : memref<8x128xf32, #tpu.memory_space<vmem>>, vector<1x128xf32>
    %c1 = arith.constant 1 : index
    %c0_6 = arith.constant 0 : index
    %4 = vector.load %arg2[%c1, %c0_6] : memref<8x128xf32, #tpu.memory_space<vmem>>, vector<1x128xf32>
    %cst = arith.constant dense<0.000000e+00> : vector<8x128xf32>
    %5 = tpu.matmul %0, %2, %cst {dimension_numbers = #tpu.dot_dimension_numbers<[1], [0], [0], [1], [0, 0, 1, 1], [], []>} : vector<8x128xf32>, vector<128x128xf32>, vector<8x128xf32> -> vector<8x128xf32>
    %cst_7 = arith.constant dense<0.000000e+00> : vector<128xf32>
    %6 = vector.multi_reduction <add>, %5, %cst_7 [0] : vector<8x128xf32> to vector<128xf32>
    %7 = vector.shape_cast %6 : vector<128xf32> to vector<1x128xf32>
    %cst_8 = arith.constant 8.000000e+00 : f32
    %8 = vector.broadcast %cst_8 : f32 to vector<1x128xf32>
    %9 = arith.divf %7, %8 : vector<1x128xf32>
    %10 = arith.mulf %5, %5 : vector<8x128xf32>
    %cst_9 = arith.constant dense<0.000000e+00> : vector<128xf32>
    %11 = vector.multi_reduction <add>, %10, %cst_9 [0] : vector<8x128xf32> to vector<128xf32>
    %12 = vector.shape_cast %11 : vector<128xf32> to vector<1x128xf32>
    %cst_10 = arith.constant 8.000000e+00 : f32
    %13 = vector.broadcast %cst_10 : f32 to vector<1x128xf32>
    %14 = arith.divf %12, %13 : vector<1x128xf32>
    %15 = arith.mulf %9, %9 : vector<1x128xf32>
    %16 = arith.subf %14, %15 : vector<1x128xf32>
    %cst_11 = arith.constant 9.99999974E-6 : f32
    %17 = vector.broadcast %cst_11 : f32 to vector<1x128xf32>
    %18 = arith.addf %16, %17 : vector<1x128xf32>
    %19 = math.rsqrt %18 : vector<1x128xf32>
    %20 = arith.mulf %3, %19 : vector<1x128xf32>
    %21 = arith.mulf %9, %20 : vector<1x128xf32>
    %22 = arith.subf %4, %21 : vector<1x128xf32>
    %23 = vector.broadcast %20 : vector<1x128xf32> to vector<8x128xf32>
    %24 = arith.mulf %5, %23 : vector<8x128xf32>
    %25 = vector.broadcast %22 : vector<1x128xf32> to vector<8x128xf32>
    %26 = arith.addf %24, %25 : vector<8x128xf32>
    %cst_12 = arith.constant 0.000000e+00 : f32
    %27 = vector.broadcast %cst_12 : f32 to vector<8x128xf32>
    %28 = arith.cmpf oge, %26, %27 : vector<8x128xf32>
    %cst_13 = arith.constant 0.00999999977 : f32
    %29 = vector.broadcast %cst_13 : f32 to vector<8x128xf32>
    %30 = arith.mulf %29, %26 : vector<8x128xf32>
    %31 = arith.select %28, %26, %30 : vector<8x128xi1>, vector<8x128xf32>
    %c1_14 = arith.constant 1 : index
    %c0_15 = arith.constant 0 : index
    %c0_16 = arith.constant 0 : index
    %32 = vector.load %arg1[%c1_14, %c0_15, %c0_16] : memref<4x128x128xf32, #tpu.memory_space<vmem>>, vector<1x128x128xf32>
    %33 = vector.shape_cast %32 : vector<1x128x128xf32> to vector<128x128xf32>
    %c2 = arith.constant 2 : index
    %c0_17 = arith.constant 0 : index
    %34 = vector.load %arg2[%c2, %c0_17] : memref<8x128xf32, #tpu.memory_space<vmem>>, vector<1x128xf32>
    %c3 = arith.constant 3 : index
    %c0_18 = arith.constant 0 : index
    %35 = vector.load %arg2[%c3, %c0_18] : memref<8x128xf32, #tpu.memory_space<vmem>>, vector<1x128xf32>
    %cst_19 = arith.constant dense<0.000000e+00> : vector<8x128xf32>
    %36 = tpu.matmul %31, %33, %cst_19 {dimension_numbers = #tpu.dot_dimension_numbers<[1], [0], [0], [1], [0, 0, 1, 1], [], []>} : vector<8x128xf32>, vector<128x128xf32>, vector<8x128xf32> -> vector<8x128xf32>
    %cst_20 = arith.constant dense<0.000000e+00> : vector<128xf32>
    %37 = vector.multi_reduction <add>, %36, %cst_20 [0] : vector<8x128xf32> to vector<128xf32>
    %38 = vector.shape_cast %37 : vector<128xf32> to vector<1x128xf32>
    %cst_21 = arith.constant 8.000000e+00 : f32
    %39 = vector.broadcast %cst_21 : f32 to vector<1x128xf32>
    %40 = arith.divf %38, %39 : vector<1x128xf32>
    %41 = arith.mulf %36, %36 : vector<8x128xf32>
    %cst_22 = arith.constant dense<0.000000e+00> : vector<128xf32>
    %42 = vector.multi_reduction <add>, %41, %cst_22 [0] : vector<8x128xf32> to vector<128xf32>
    %43 = vector.shape_cast %42 : vector<128xf32> to vector<1x128xf32>
    %cst_23 = arith.constant 8.000000e+00 : f32
    %44 = vector.broadcast %cst_23 : f32 to vector<1x128xf32>
    %45 = arith.divf %43, %44 : vector<1x128xf32>
    %46 = arith.mulf %40, %40 : vector<1x128xf32>
    %47 = arith.subf %45, %46 : vector<1x128xf32>
    %cst_24 = arith.constant 9.99999974E-6 : f32
    %48 = vector.broadcast %cst_24 : f32 to vector<1x128xf32>
    %49 = arith.addf %47, %48 : vector<1x128xf32>
    %50 = math.rsqrt %49 : vector<1x128xf32>
    %51 = arith.mulf %34, %50 : vector<1x128xf32>
    %52 = arith.mulf %40, %51 : vector<1x128xf32>
    %53 = arith.subf %35, %52 : vector<1x128xf32>
    %54 = vector.broadcast %51 : vector<1x128xf32> to vector<8x128xf32>
    %55 = arith.mulf %36, %54 : vector<8x128xf32>
    %56 = vector.broadcast %53 : vector<1x128xf32> to vector<8x128xf32>
    %57 = arith.addf %55, %56 : vector<8x128xf32>
    %cst_25 = arith.constant 0.000000e+00 : f32
    %58 = vector.broadcast %cst_25 : f32 to vector<8x128xf32>
    %59 = arith.cmpf oge, %57, %58 : vector<8x128xf32>
    %cst_26 = arith.constant 0.00999999977 : f32
    %60 = vector.broadcast %cst_26 : f32 to vector<8x128xf32>
    %61 = arith.mulf %60, %57 : vector<8x128xf32>
    %62 = arith.select %59, %57, %61 : vector<8x128xi1>, vector<8x128xf32>
    %c2_27 = arith.constant 2 : index
    %c0_28 = arith.constant 0 : index
    %c0_29 = arith.constant 0 : index
    %63 = vector.load %arg1[%c2_27, %c0_28, %c0_29] : memref<4x128x128xf32, #tpu.memory_space<vmem>>, vector<1x128x128xf32>
    %64 = vector.shape_cast %63 : vector<1x128x128xf32> to vector<128x128xf32>
    %c4 = arith.constant 4 : index
    %c0_30 = arith.constant 0 : index
    %65 = vector.load %arg2[%c4, %c0_30] : memref<8x128xf32, #tpu.memory_space<vmem>>, vector<1x128xf32>
    %c5 = arith.constant 5 : index
    %c0_31 = arith.constant 0 : index
    %66 = vector.load %arg2[%c5, %c0_31] : memref<8x128xf32, #tpu.memory_space<vmem>>, vector<1x128xf32>
    %cst_32 = arith.constant dense<0.000000e+00> : vector<8x128xf32>
    %67 = tpu.matmul %62, %64, %cst_32 {dimension_numbers = #tpu.dot_dimension_numbers<[1], [0], [0], [1], [0, 0, 1, 1], [], []>} : vector<8x128xf32>, vector<128x128xf32>, vector<8x128xf32> -> vector<8x128xf32>
    %cst_33 = arith.constant dense<0.000000e+00> : vector<128xf32>
    %68 = vector.multi_reduction <add>, %67, %cst_33 [0] : vector<8x128xf32> to vector<128xf32>
    %69 = vector.shape_cast %68 : vector<128xf32> to vector<1x128xf32>
    %cst_34 = arith.constant 8.000000e+00 : f32
    %70 = vector.broadcast %cst_34 : f32 to vector<1x128xf32>
    %71 = arith.divf %69, %70 : vector<1x128xf32>
    %72 = arith.mulf %67, %67 : vector<8x128xf32>
    %cst_35 = arith.constant dense<0.000000e+00> : vector<128xf32>
    %73 = vector.multi_reduction <add>, %72, %cst_35 [0] : vector<8x128xf32> to vector<128xf32>
    %74 = vector.shape_cast %73 : vector<128xf32> to vector<1x128xf32>
    %cst_36 = arith.constant 8.000000e+00 : f32
    %75 = vector.broadcast %cst_36 : f32 to vector<1x128xf32>
    %76 = arith.divf %74, %75 : vector<1x128xf32>
    %77 = arith.mulf %71, %71 : vector<1x128xf32>
    %78 = arith.subf %76, %77 : vector<1x128xf32>
    %cst_37 = arith.constant 9.99999974E-6 : f32
    %79 = vector.broadcast %cst_37 : f32 to vector<1x128xf32>
    %80 = arith.addf %78, %79 : vector<1x128xf32>
    %81 = math.rsqrt %80 : vector<1x128xf32>
    %82 = arith.mulf %65, %81 : vector<1x128xf32>
    %83 = arith.mulf %71, %82 : vector<1x128xf32>
    %84 = arith.subf %66, %83 : vector<1x128xf32>
    %85 = vector.broadcast %82 : vector<1x128xf32> to vector<8x128xf32>
    %86 = arith.mulf %67, %85 : vector<8x128xf32>
    %87 = vector.broadcast %84 : vector<1x128xf32> to vector<8x128xf32>
    %88 = arith.addf %86, %87 : vector<8x128xf32>
    %cst_38 = arith.constant 0.000000e+00 : f32
    %89 = vector.broadcast %cst_38 : f32 to vector<8x128xf32>
    %90 = arith.cmpf oge, %88, %89 : vector<8x128xf32>
    %cst_39 = arith.constant 0.00999999977 : f32
    %91 = vector.broadcast %cst_39 : f32 to vector<8x128xf32>
    %92 = arith.mulf %91, %88 : vector<8x128xf32>
    %93 = arith.select %90, %88, %92 : vector<8x128xi1>, vector<8x128xf32>
    %c3_40 = arith.constant 3 : index
    %c0_41 = arith.constant 0 : index
    %c0_42 = arith.constant 0 : index
    %94 = vector.load %arg1[%c3_40, %c0_41, %c0_42] : memref<4x128x128xf32, #tpu.memory_space<vmem>>, vector<1x128x128xf32>
    %95 = vector.shape_cast %94 : vector<1x128x128xf32> to vector<128x128xf32>
    %c6 = arith.constant 6 : index
    %c0_43 = arith.constant 0 : index
    %96 = vector.load %arg2[%c6, %c0_43] : memref<8x128xf32, #tpu.memory_space<vmem>>, vector<1x128xf32>
    %cst_44 = arith.constant dense<0.000000e+00> : vector<8x128xf32>
    %97 = tpu.matmul %93, %95, %cst_44 {dimension_numbers = #tpu.dot_dimension_numbers<[1], [0], [0], [1], [0, 0, 1, 1], [], []>} : vector<8x128xf32>, vector<128x128xf32>, vector<8x128xf32> -> vector<8x128xf32>
    %98 = vector.broadcast %96 : vector<1x128xf32> to vector<8x128xf32>
    %99 = arith.addf %97, %98 : vector<8x128xf32>
    %c0_45 = arith.constant 0 : index
    %c0_46 = arith.constant 0 : index
    %100 = vector.load %arg3[%c0_45, %c0_46] : memref<8x128xf32, #tpu.memory_space<vmem>>, vector<8x128xf32>
    tpu.vector_store %arg3[%c0_45, %c0_46], %99 {strides = array<i32>} : memref<8x128xf32, #tpu.memory_space<vmem>>, vector<8x128xf32>,
    return
  }
}

</mosaic_0001>

<llo_original>
// kernel: switchable_star_forward.1
$region0: #{switchable_star_forward.1}
  #allocation0 [shape = 'u32[]', space=smem, size = 0x4, offset = 0x4, fixed_abs, tag = 'smem constant byte address 0x4 - core index']
  #allocation1 [shape = 'u32[72,128]{1,0:T(1,128)}', space=vmem, size = 0x9000, scoped, tag = 'internal scratch']
  %s0 = inlined_call_operand.vmem [shape: f32[8,128], index: 0, kind: input, shape index: {}]
  %s1 = inlined_call_operand.hbm [shape: f32[4,128,128], index: 1, kind: input, shape index: {}]
  %s2 = inlined_call_operand.vmem [shape: f32[8,128], index: 2, kind: input, shape index: {}]
  %s3 = inlined_call_operand.vmem [shape: f32[8,128], index: 3, kind: output, shape index: {}]
  %s4 = sld [smem:[#allocation0]]
  $region26: #{switchable_star_forward.1} parent=0
    _
  %s6 = ssub.s32 1, %s4
  %s7 = scalar_select 0, %s6, %s4
  $region1: #{switchable_star_forward.1} parent=0
    #allocation2 [shape = 'u8[262144]{0}', space=vmem, size = 0x40000, scoped, tag = 'input window, operand 1, single buffered']
    #allocation3 [shape = 's32[1]{0}', space=sflag, size = 0x4, scoped, tag = 'scoped memory for switchable_star_forward.1']
    %8 = vsyncpa [#allocation3], 0
    // Predicated region
    $region2: #{switchable_star_forward.1} parent=1 // pred_check
      _
    $region3: #{switchable_star_forward.1} parent=1 // pred_check_branch
      %10 = sbr.rel (0) target = $region5
    $region4: #{switchable_star_forward.1} parent=1 // pred_region
      _
    $region5: #{switchable_star_forward.1} parent=1 // pred_fallthru
      _
    // Predicated region
    $region6: #{switchable_star_forward.1} parent=1 // pred_check
      _
    $region7: #{switchable_star_forward.1} parent=1 // pred_check_branch
      %12 = sbr.rel (0) target = $region9
    $region8: #{switchable_star_forward.1} parent=1 // pred_region
      %14 = vsyncadd [#allocation3], 0
      %s15 = sshll.u32 %s1, 4
      %s16 = int_to_ptr.hbm [resolvable:$true] %s15
      %s17 = sshll.u32 [#allocation2], 4
      %s18 = int_to_ptr.vmem [resolvable:$true] %s17
      %23 = dma.hbm_to_vmem [thread:$0]  %s16, 8192, %s18, [#allocation3], 128, 128, 8
    $region9: #{switchable_star_forward.1} parent=1 // pred_fallthru
      _
    // Predicated region
    $region10: #{switchable_star_forward.1} parent=1 // pred_check
      _
    $region11: #{switchable_star_forward.1} parent=1 // pred_check_branch
      %25 = sbr.rel (0) target = $region13
    $region12: #{switchable_star_forward.1} parent=1 // pred_region
      _
    $region13: #{switchable_star_forward.1} parent=1 // pred_fallthru
      _
    // Predicated region
    $region14: #{switchable_star_forward.1} parent=1 // pred_check
      _
    $region15: #{switchable_star_forward.1} parent=1 // pred_check_branch
      %27 = sbr.rel (0) target = $region17
    $region16: #{switchable_star_forward.1} parent=1 // pred_region
      %29 = dma.done [#allocation3], 8192
    $region17: #{switchable_star_forward.1} parent=1 // pred_fallthru
      _
    %v30 = vld [vmem:[%s0] sm:$0xff]
    %v31 = vld [vmem:[#allocation2] sm:$0xff]
    %v32 = vld [vmem:[#allocation2 + $0x8] sm:$0xff]
    %v33 = vld [vmem:[#allocation2 + $0x10] sm:$0xff]
    %v34 = vld [vmem:[#allocation2 + $0x18] sm:$0xff]
    %v35 = vld [vmem:[#allocation2 + $0x20] sm:$0xff]
    %v36 = vld [vmem:[#allocation2 + $0x28] sm:$0xff]
    %v37 = vld [vmem:[#allocation2 + $0x30] sm:$0xff]
    %v38 = vld [vmem:[#allocation2 + $0x38] sm:$0xff]
    %v39 = vld [vmem:[#allocation2 + $0x40] sm:$0xff]
    %v40 = vld [vmem:[#allocation2 + $0x48] sm:$0xff]
    %v41 = vld [vmem:[#allocation2 + $0x50] sm:$0xff]
    %v42 = vld [vmem:[#allocation2 + $0x58] sm:$0xff]
    %v43 = vld [vmem:[#allocation2 + $0x60] sm:$0xff]
    %v44 = vld [vmem:[#allocation2 + $0x68] sm:$0xff]
    %v45 = vld [vmem:[#allocation2 + $0x70] sm:$0xff]
    %v46 = vld [vmem:[#allocation2 + $0x78] sm:$0xff]
    %v47 = vld [vmem:[%s2] sm:$0x1]
    %v48 = vld [vmem:[%s2 + $0x1] sm:$0x1]
    %49 = vmatpush.msra.mxu0 %v46
    %50 = vmatpush.msra.mxu0 %v45
    %51 = vmatpush.msra.mxu0 %v44
    %52 = vmatpush.msra.mxu0 %v43
    %53 = vmatpush.msra.mxu0 %v42
    %54 = vmatpush.msra.mxu0 %v41
    %55 = vmatpush.msra.mxu0 %v40
    %56 = vmatpush.msra.mxu0 %v39
    %57 = vmatpush.msra.mxu0 %v38
    %58 = vmatpush.msra.mxu0 %v37
    %59 = vmatpush.msra.mxu0 %v36
    %60 = vmatpush.msra.mxu0 %v35
    %61 = vmatpush.msra.mxu0 %v34
    %62 = vmatpush.msra.mxu0 %v33
    %63 = vmatpush.msra.mxu0 %v32
    %64 = vmatpush.msra.mxu0 %v31
    %65 = vmatmul.f32.gmra.mxu0 %v30
    %v66 = vpop.f32.mrf.mxu0
    %v67 = vadd.f32 0.0, %v66
    %68 = vdwg.mxu0
    %v69 = vrot.slane %v67, 4
    %v70 = vadd.f32 %v67, %v69
    %v71 = vrot.slane %v70, 2
    %v72 = vadd.f32 %v70, %v71
    %v73 = vrot.slane %v72, 1
    %v74 = vadd.f32 %v72, %v73
    %v75 = vrcp.pop 8.0
    %v76 = vmul.f32 8.0, %v75
    %v77 = vsub.f32 1.0, %v76
    %v78 = vmul.f32 %v75, %v77
    %v79 = vadd.f32 %v75, %v78
    %vm80 = vweird.f32 %v75
    %v81 = vsel %vm80, %v75, %v79
    %v82 = vmul.f32 %v74, %v81
    %v83 = vmul.f32 %v67, %v67
    %v84 = vrot.slane %v83, 4
    %v85 = vadd.f32 %v83, %v84
    %v86 = vrot.slane %v85, 2
    %v87 = vadd.f32 %v85, %v86
    %v88 = vrot.slane %v87, 1
    %v89 = vadd.f32 %v87, %v88
    %v90 = vmul.f32 %v89, %v81
    %v91 = vmul.f32 %v82, %v82
    %v92 = vsub.f32 %v90, %v91
    %v93 = vadd.f32 %v92, 1e-05
    %v94 = vrsqrt.pop %v93
    %v95 = vmul.f32 %v94, %v93
    %v96 = vmul.f32 %v95, %v94
    %v97 = vmul.f32 0.5, %v96
    %v98 = vsub.f32 1.5, %v97
    %v99 = vmul.f32 %v94, %v98
    %vm100 = vweird.f32 %v93
    %vm101 = vweird.f32 %v94
    %vm102 = vmor %vm100, %vm101
    %v103 = vsel %vm102, %v94, %v99
    %v104 = vmul.f32 %v47, %v103
    %v105 = vmul.f32 %v82, %v104
    %v106 = vsub.f32 %v48, %v105
    %v107 = vperm.slane %v104, 0
    %v108 = vmul.f32 %v67, %v107
    %v109 = vperm.slane %v106, 0
    %v110 = vadd.f32 %v108, %v109
    %vm111 = vcmp.ge.f32.partialorder %v110, 0.0
    %v112 = vmul.f32 %v110, 0.01
    %v113 = vsel %vm111, %v110, %v112
    %s114 = scalar_lea.vmem [#allocation2], 128
    %v115 = vld [vmem:[%s114] sm:$0xff]
    %v116 = vld [vmem:[%s114 + $0x8] sm:$0xff]
    %v117 = vld [vmem:[%s114 + $0x10] sm:$0xff]
    %v118 = vld [vmem:[%s114 + $0x18] sm:$0xff]
    %v119 = vld [vmem:[%s114 + $0x20] sm:$0xff]
    %v120 = vld [vmem:[%s114 + $0x28] sm:$0xff]
    %v121 = vld [vmem:[%s114 + $0x30] sm:$0xff]
    %v122 = vld [vmem:[%s114 + $0x38] sm:$0xff]
    %v123 = vld [vmem:[%s114 + $0x40] sm:$0xff]
    %v124 = vld [vmem:[%s114 + $0x48] sm:$0xff]
    %v125 = vld [vmem:[%s114 + $0x50] sm:$0xff]
    %v126 = vld [vmem:[%s114 + $0x58] sm:$0xff]
    %v127 = vld [vmem:[%s114 + $0x60] sm:$0xff]
    %v128 = vld [vmem:[%s114 + $0x68] sm:$0xff]
    %v129 = vld [vmem:[%s114 + $0x70] sm:$0xff]
    %v130 = vld [vmem:[%s114 + $0x78] sm:$0xff]
    %v131 = vld [vmem:[%s2 + $0x2] sm:$0x1]
    %v132 = vld [vmem:[%s2 + $0x3] sm:$0x1]
    %133 = vmatpush.msra.mxu0 %v130
    %134 = vmatpush.msra.mxu0 %v129
    %135 = vmatpush.msra.mxu0 %v128
    %136 = vmatpush.msra.mxu0 %v127
    %137 = vmatpush.msra.mxu0 %v126
    %138 = vmatpush.msra.mxu0 %v125
    %139 = vmatpush.msra.mxu0 %v124
    %140 = vmatpush.msra.mxu0 %v123
    %141 = vmatpush.msra.mxu0 %v122
    %142 = vmatpush.msra.mxu0 %v121
    %143 = vmatpush.msra.mxu0 %v120
    %144 = vmatpush.msra.mxu0 %v119
    %145 = vmatpush.msra.mxu0 %v118
    %146 = vmatpush.msra.mxu0 %v117
    %147 = vmatpush.msra.mxu0 %v116
    %148 = vmatpush.msra.mxu0 %v115
    %149 = vmatmul.f32.gmra.mxu0 %v113
    %v150 = vpop.f32.mrf.mxu0
    %v151 = vadd.f32 0.0, %v150
    %152 = vdwg.mxu0
    %v153 = vrot.slane %v151, 4
    %v154 = vadd.f32 %v151, %v153
    %v155 = vrot.slane %v154, 2
    %v156 = vadd.f32 %v154, %v155
    %v157 = vrot.slane %v156, 1
    %v158 = vadd.f32 %v156, %v157
    %v159 = vmul.f32 %v158, %v81
    %v160 = vmul.f32 %v151, %v151
    %v161 = vrot.slane %v160, 4
    %v162 = vadd.f32 %v160, %v161
    %v163 = vrot.slane %v162, 2
    %v164 = vadd.f32 %v162, %v163
    %v165 = vrot.slane %v164, 1
    %v166 = vadd.f32 %v164, %v165
    %v167 = vmul.f32 %v166, %v81
    %v168 = vmul.f32 %v159, %v159
    %v169 = vsub.f32 %v167, %v168
    %v170 = vadd.f32 %v169, 1e-05
    %v171 = vrsqrt.pop %v170
    %v172 = vmul.f32 %v171, %v170
    %v173 = vmul.f32 %v172, %v171
    %v174 = vmul.f32 0.5, %v173
    %v175 = vsub.f32 1.5, %v174
    %v176 = vmul.f32 %v171, %v175
    %vm177 = vweird.f32 %v170
    %vm178 = vweird.f32 %v171
    %vm179 = vmor %vm177, %vm178
    %v180 = vsel %vm179, %v171, %v176
    %v181 = vmul.f32 %v131, %v180
    %v182 = vmul.f32 %v159, %v181
    %v183 = vsub.f32 %v132, %v182
    %v184 = vperm.slane %v181, 0
    %v185 = vmul.f32 %v151, %v184
    %v186 = vperm.slane %v183, 0
    %v187 = vadd.f32 %v185, %v186
    %vm188 = vcmp.ge.f32.partialorder %v187, 0.0
    %v189 = vmul.f32 %v187, 0.01
    %v190 = vsel %vm188, %v187, %v189
    %s191 = scalar_lea.vmem [#allocation2], 256
    %v192 = vld [vmem:[%s191] sm:$0xff]
    %v193 = vld [vmem:[%s191 + $0x8] sm:$0xff]
    %v194 = vld [vmem:[%s191 + $0x10] sm:$0xff]
    %v195 = vld [vmem:[%s191 + $0x18] sm:$0xff]
    %v196 = vld [vmem:[%s191 + $0x20] sm:$0xff]
    %v197 = vld [vmem:[%s191 + $0x28] sm:$0xff]
    %v198 = vld [vmem:[%s191 + $0x30] sm:$0xff]
    %v199 = vld [vmem:[%s191 + $0x38] sm:$0xff]
    %v200 = vld [vmem:[%s191 + $0x40] sm:$0xff]
    %v201 = vld [vmem:[%s191 + $0x48] sm:$0xff]
    %v202 = vld [vmem:[%s191 + $0x50] sm:$0xff]
    %v203 = vld [vmem:[%s191 + $0x58] sm:$0xff]
    %v204 = vld [vmem:[%s191 + $0x60] sm:$0xff]
    %v205 = vld [vmem:[%s191 + $0x68] sm:$0xff]
    %v206 = vld [vmem:[%s191 + $0x70] sm:$0xff]
    %v207 = vld [vmem:[%s191 + $0x78] sm:$0xff]
    %v208 = vld [vmem:[%s2 + $0x4] sm:$0x1]
    %v209 = vld [vmem:[%s2 + $0x5] sm:$0x1]
    %210 = vmatpush.msra.mxu0 %v207
    %211 = vmatpush.msra.mxu0 %v206
    %212 = vmatpush.msra.mxu0 %v205
    %213 = vmatpush.msra.mxu0 %v204
    %214 = vmatpush.msra.mxu0 %v203
    %215 = vmatpush.msra.mxu0 %v202
    %216 = vmatpush.msra.mxu0 %v201
    %217 = vmatpush.msra.mxu0 %v200
    %218 = vmatpush.msra.mxu0 %v199
    %219 = vmatpush.msra.mxu0 %v198
    %220 = vmatpush.msra.mxu0 %v197
    %221 = vmatpush.msra.mxu0 %v196
    %222 = vmatpush.msra.mxu0 %v195
    %223 = vmatpush.msra.mxu0 %v194
    %224 = vmatpush.msra.mxu0 %v193
    %225 = vmatpush.msra.mxu0 %v192
    %226 = vmatmul.f32.gmra.mxu0 %v190
    %v227 = vpop.f32.mrf.mxu0
    %v228 = vadd.f32 0.0, %v227
    %229 = vdwg.mxu0
    %v230 = vrot.slane %v228, 4
    %v231 = vadd.f32 %v228, %v230
    %v232 = vrot.slane %v231, 2
    %v233 = vadd.f32 %v231, %v232
    %v234 = vrot.slane %v233, 1
    %v235 = vadd.f32 %v233, %v234
    %v236 = vmul.f32 %v235, %v81
    %v237 = vmul.f32 %v228, %v228
    %v238 = vrot.slane %v237, 4
    %v239 = vadd.f32 %v237, %v238
    %v240 = vrot.slane %v239, 2
    %v241 = vadd.f32 %v239, %v240
    %v242 = vrot.slane %v241, 1
    %v243 = vadd.f32 %v241, %v242
    %v244 = vmul.f32 %v243, %v81
    %v245 = vmul.f32 %v236, %v236
    %v246 = vsub.f32 %v244, %v245
    %v247 = vadd.f32 %v246, 1e-05
    %v248 = vrsqrt.pop %v247
    %v249 = vmul.f32 %v248, %v247
    %v250 = vmul.f32 %v249, %v248
    %v251 = vmul.f32 0.5, %v250
    %v252 = vsub.f32 1.5, %v251
    %v253 = vmul.f32 %v248, %v252
    %vm254 = vweird.f32 %v247
    %vm255 = vweird.f32 %v248
    %vm256 = vmor %vm254, %vm255
    %v257 = vsel %vm256, %v248, %v253
    %v258 = vmul.f32 %v208, %v257
    %v259 = vmul.f32 %v236, %v258
    %v260 = vsub.f32 %v209, %v259
    %v261 = vperm.slane %v258, 0
    %v262 = vmul.f32 %v228, %v261
    %v263 = vperm.slane %v260, 0
    %v264 = vadd.f32 %v262, %v263
    %vm265 = vcmp.ge.f32.partialorder %v264, 0.0
    %v266 = vmul.f32 %v264, 0.01
    %v267 = vsel %vm265, %v264, %v266
    %s268 = scalar_lea.vmem [#allocation2], 384
    %v269 = vld [vmem:[%s268] sm:$0xff]
    %v270 = vld [vmem:[%s268 + $0x8] sm:$0xff]
    %v271 = vld [vmem:[%s268 + $0x10] sm:$0xff]
    %v272 = vld [vmem:[%s268 + $0x18] sm:$0xff]
    %v273 = vld [vmem:[%s268 + $0x20] sm:$0xff]
    %v274 = vld [vmem:[%s268 + $0x28] sm:$0xff]
    %v275 = vld [vmem:[%s268 + $0x30] sm:$0xff]
    %v276 = vld [vmem:[%s268 + $0x38] sm:$0xff]
    %v277 = vld [vmem:[%s268 + $0x40] sm:$0xff]
    %v278 = vld [vmem:[%s268 + $0x48] sm:$0xff]
    %v279 = vld [vmem:[%s268 + $0x50] sm:$0xff]
    %v280 = vld [vmem:[%s268 + $0x58] sm:$0xff]
    %v281 = vld [vmem:[%s268 + $0x60] sm:$0xff]
    %v282 = vld [vmem:[%s268 + $0x68] sm:$0xff]
    %v283 = vld [vmem:[%s268 + $0x70] sm:$0xff]
    %v284 = vld [vmem:[%s268 + $0x78] sm:$0xff]
    %v285 = vld [vmem:[%s2 + $0x6] sm:$0x1]
    %v286 = vperm.slane %v285, 0
    %287 = vmatpush.msra.mxu0 %v284
    %288 = vmatpush.msra.mxu0 %v283
    %289 = vmatpush.msra.mxu0 %v282
    %290 = vmatpush.msra.mxu0 %v281
    %291 = vmatpush.msra.mxu0 %v280
    %292 = vmatpush.msra.mxu0 %v279
    %293 = vmatpush.msra.mxu0 %v278
    %294 = vmatpush.msra.mxu0 %v277
    %295 = vmatpush.msra.mxu0 %v276
    %296 = vmatpush.msra.mxu0 %v275
    %297 = vmatpush.msra.mxu0 %v274
    %298 = vmatpush.msra.mxu0 %v273
    %299 = vmatpush.msra.mxu0 %v272
    %300 = vmatpush.msra.mxu0 %v271
    %301 = vmatpush.msra.mxu0 %v270
    %302 = vmatpush.msra.mxu0 %v269
    %303 = vmatmul.f32.gmra.mxu0 %v267
    %v304 = vpop.f32.mrf.mxu0
    %v305 = vadd.f32 %v286, %v304
    %306 = vdwg.mxu0
    %307 = vst [vmem:[%s3] sm:$0xff] %v305
    // Predicated region
    $region18: #{switchable_star_forward.1} parent=1 // pred_check
      _
    $region19: #{switchable_star_forward.1} parent=1 // pred_check_branch
      %309 = sbr.rel (0) target = $region21
    $region20: #{switchable_star_forward.1} parent=1 // pred_region
      _
    $region21: #{switchable_star_forward.1} parent=1 // pred_fallthru
      _
    // Predicated region
    $region22: #{switchable_star_forward.1} parent=1 // pred_check
      _
    $region23: #{switchable_star_forward.1} parent=1 // pred_check_branch
      %311 = sbr.rel (0) target = $region25
    $region24: #{switchable_star_forward.1} parent=1 // pred_region
      _
    $region25: #{switchable_star_forward.1} parent=1 // pred_fallthru
      _
    %312 = vsyncpa [#allocation3], 1

</llo_original>
